<compile_context>
chip_gen: v7x
topology: tpu7x:2x2x1
jax: 0.10.0
libtpu: 0.0.40
codegen_flags: <defaults>
</compile_context>

<pallas_src>
import jax
import jax.numpy as jnp
from jax.experimental import pallas as pl
from jax.experimental.pallas import tpu as pltpu
import numpy as np


# ----------------------------------------------------------------------------
# Kernel body: whole-tile elementwise clamped sigmoid.
# ----------------------------------------------------------------------------
def _sigmoid_kernel(x_ref, o_ref):
    x = x_ref[...].astype(jnp.float32)
    sig = 1.0 / (1.0 + jnp.exp(-x))
    out = jnp.where(x < -8.0, 0.0, jnp.where(x > 8.0, 1.0, sig))
    o_ref[...] = out.astype(o_ref.dtype)


def _sigmoid_ref_math(x):
    """Plain-XLA clamped sigmoid (used for tiny tails / reference)."""
    xf = x.astype(jnp.float32)
    sig = 1.0 / (1.0 + jnp.exp(-xf))
    out = jnp.where(xf < -8.0, 0.0, jnp.where(xf > 8.0, 1.0, sig))
    return out.astype(x.dtype)


def _vmem_capacity_bytes() -> int:
    """Per-TensorCore VMEM capacity; conservative default if query fails."""
    try:
        return int(pltpu.get_tpu_info().vmem_capacity_bytes)
    except Exception:
        return 64 * 1024 * 1024  # v7x-safe conservative default


def _run_aligned_1d(xf: jax.Array) -> jax.Array:
    """Run the Pallas kernel on a 1-D array whose length is a multiple of 128."""
    n = xf.shape[0]
    dtype = xf.dtype
    itemsize = jnp.dtype(dtype).itemsize

    # Widest lane dimension that divides numel (lane-dense unmasked vld/vst).
    width = 128
    for cand in (1024, 512, 256):
        if n % cand == 0:
            width = cand
            break

    rows = n // width
    x2d = xf.reshape(rows, width)

    # Native sublane multiple: 8 for fp32, 16 for bf16/fp16, 32 for 8-bit.
    sublane = max(8, 32 // max(itemsize, 1))

    # Generation-aware block sizing: target ~4 MiB per block, but never let
    # (2 arrays x 2 buffers x block) exceed ~half of per-TC VMEM.
    vmem_cap = _vmem_capacity_bytes()
    max_block_bytes = vmem_cap // 8                      # 2x2x block <= vmem/2
    target_block_bytes = min(4 * 1024 * 1024, max_block_bytes)

    block_rows = (target_block_bytes // (width * itemsize)) // sublane * sublane
    block_rows = max(sublane, block_rows)

    if rows <= sublane:
        # Too small to tile on the sublane axis: single full-extent block.
        block_rows = rows
        grid = (1,)
    else:
        # Ensure the parallel grid axis has multiple steps so v7x can shard
        # across both TensorCores (and v5e/v6e keep DMA/compute pipelining).
        target_steps = 4 if rows >= 4 * sublane else 2
        cap_rows = max(sublane, (rows // target_steps) // sublane * sublane)
        block_rows = min(block_rows, cap_rows, rows)
        grid = (pl.cdiv(rows, block_rows),)   # ragged last block masked by Pallas

    block_bytes = block_rows * width * itemsize
    vmem_limit = int(min(vmem_cap // 2,
                         max(32 * 1024 * 1024, 4 * block_bytes + (8 << 20))))

    cost = pl.CostEstimate(
        flops=4 * n,
        transcendentals=n,
        bytes_accessed=2 * n * itemsize,
    )

    out2d = pl.pallas_call(
        _sigmoid_kernel,
        out_shape=jax.ShapeDtypeStruct((rows, width), dtype),
        grid_spec=pltpu.PrefetchScalarGridSpec(
            num_scalar_prefetch=0,
            grid=grid,
            in_specs=[pl.BlockSpec((block_rows, width), lambda i: (i, 0))],
            out_specs=pl.BlockSpec((block_rows, width), lambda i: (i, 0)),
        ),
        compiler_params=pltpu.CompilerParams(
            dimension_semantics=("parallel",),
            vmem_limit_bytes=vmem_limit,
        ),
        cost_estimate=cost,
    )(x2d)

    return out2d.reshape(-1)


def pallas_sigmoid(x: jax.Array) -> jax.Array:
    """Elementwise clamped sigmoid on a tensor of any shape (fp32/bf16/fp16)."""
    orig_shape = x.shape
    n = int(np.prod(orig_shape)) if orig_shape else 1
    if n == 0:
        return x

    xf = x.reshape(-1)
    n_aligned = (n // 128) * 128

    if n_aligned == 0:
        # Tiny input (< 128 elements): plain XLA is the right tool.
        return _sigmoid_ref_math(xf).reshape(orig_shape)

    if n_aligned == n:
        out = _run_aligned_1d(xf)
    else:
        # Kernel on the 128-aligned prefix; plain XLA on the < 128-element tail.
        head = _run_aligned_1d(xf[:n_aligned])
        tail = _sigmoid_ref_math(xf[n_aligned:])
        out = jnp.concatenate([head, tail], axis=0)

    return out.reshape(orig_shape)


class ModelNew:
    """JAX/Pallas equivalent of the PyTorch ModelNew (custom sigmoid)."""

    def __init__(self):
        pass  # no parameters

    def __call__(self, x: jax.Array) -> jax.Array:
        return pallas_sigmoid(x)


if __name__ == "__main__":
    key = jax.random.PRNGKey(0)
    # Small NCHW-like input consistent with "input tensor of any shape".
    x = jax.random.normal(key, (2, 4, 16, 16), dtype=jnp.float32) * 4.0

    model = ModelNew()
    y = jax.block_until_ready(model(x))

    ref = _sigmoid_ref_math(x)
    np.testing.assert_allclose(np.asarray(y), np.asarray(ref),
                               rtol=1e-6, atol=1e-6)
    assert y.shape == x.shape and y.dtype == x.dtype

    # Shape whose numel is not a multiple of 128 — hits prefix + XLA-tail path.
    x2 = jax.random.normal(jax.random.PRNGKey(1), (3, 5, 7), dtype=jnp.float32) * 6.0
    y2 = jax.block_until_ready(model(x2))
    np.testing.assert_allclose(np.asarray(y2), np.asarray(_sigmoid_ref_math(x2)),
                               rtol=1e-6, atol=1e-6)

    # Medium-sized input to exercise the multi-step parallel grid path.
    x3 = jax.random.normal(jax.random.PRNGKey(2), (64, 64, 64), dtype=jnp.float32) * 5.0
    y3 = jax.block_until_ready(model(x3))
    np.testing.assert_allclose(np.asarray(y3), np.asarray(_sigmoid_ref_math(x3)),
                               rtol=1e-6, atol=1e-6)

    print("KERNEL_OK")
</pallas_src>

<mosaic_0001>
module attributes {stable_mosaic.version = 11 : i64} {
  func.func @_sigmoid_kernel(%arg0: i32, %arg1: memref<2x1024xf32, #tpu.memory_space<vmem>>, %arg2: memref<2x1024xf32, #tpu.memory_space<vmem>>) attributes {dimension_semantics = [#tpu.dimension_semantics<parallel>], iteration_bounds = array<i64: 1>, scalar_prefetch = 0 : i64, scratch_operands = 0 : i64, tpu.core_type = #tpu.core_type<tc>, window_params = [{transform_indices = @transform_0, window_bounds = array<i64: 2, 1024>}, {transform_indices = @transform_1, window_bounds = array<i64: 2, 1024>}]} {
    %c0 = arith.constant 0 : index
    %c0_0 = arith.constant 0 : index
    %0 = vector.load %arg1[%c0, %c0_0] : memref<2x1024xf32, #tpu.memory_space<vmem>>, vector<2x1024xf32>
    %cst = arith.constant 0.000000e+00 : f32
    %1 = vector.broadcast %cst : f32 to vector<2x1024xf32>
    %2 = arith.subf %1, %0 : vector<2x1024xf32>
    %3 = math.exp %2 : vector<2x1024xf32>
    %cst_1 = arith.constant 1.000000e+00 : f32
    %4 = vector.broadcast %cst_1 : f32 to vector<2x1024xf32>
    %5 = arith.addf %4, %3 : vector<2x1024xf32>
    %cst_2 = arith.constant 1.000000e+00 : f32
    %6 = vector.broadcast %cst_2 : f32 to vector<2x1024xf32>
    %7 = arith.divf %6, %5 : vector<2x1024xf32>
    %cst_3 = arith.constant -8.000000e+00 : f32
    %8 = vector.broadcast %cst_3 : f32 to vector<2x1024xf32>
    %9 = arith.cmpf olt, %0, %8 : vector<2x1024xf32>
    %cst_4 = arith.constant 8.000000e+00 : f32
    %10 = vector.broadcast %cst_4 : f32 to vector<2x1024xf32>
    %11 = arith.cmpf ogt, %0, %10 : vector<2x1024xf32>
    %cst_5 = arith.constant 1.000000e+00 : f32
    %12 = vector.broadcast %cst_5 : f32 to vector<2x1024xf32>
    %13 = arith.select %11, %12, %7 : vector<2x1024xi1>, vector<2x1024xf32>
    %cst_6 = arith.constant 0.000000e+00 : f32
    %14 = vector.broadcast %cst_6 : f32 to vector<2x1024xf32>
    %15 = arith.select %9, %14, %13 : vector<2x1024xi1>, vector<2x1024xf32>
    %c0_7 = arith.constant 0 : index
    %c0_8 = arith.constant 0 : index
    %16 = vector.load %arg2[%c0_7, %c0_8] : memref<2x1024xf32, #tpu.memory_space<vmem>>, vector<2x1024xf32>
    tpu.vector_store %arg2[%c0_7, %c0_8], %15 {strides = array<i32>} : memref<2x1024xf32, #tpu.memory_space<vmem>>, vector<2x1024xf32>,
    return
  }
  func.func @transform_0(%arg0: i32) -> (i32, i32) {
    %c0_i32 = arith.constant 0 : i32
    %c0_i32_0 = arith.constant 0 : i32
    return %arg0, %c0_i32 : i32, i32
  }
  func.func @transform_1(%arg0: i32) -> (i32, i32) {
    %c0_i32 = arith.constant 0 : i32
    %c0_i32_0 = arith.constant 0 : i32
    return %arg0, %c0_i32 : i32, i32
  }
}

</mosaic_0001>

<llo_original>
// kernel: tpu_custom_call.1
$region0: #{tpu_custom_call.1}
  #allocation0 [shape = 'u32[]', space=smem, size = 0x4, offset = 0x4, fixed_abs, tag = 'smem constant byte address 0x4 - core index']
  #allocation1 [shape = 'u32[144,128]{1,0:T(1,128)}', space=vmem, size = 0x12000, scoped, tag = 'internal scratch']
  %s0 = inlined_call_operand.hbm [shape: f32[2,1024], index: 0, kind: input, shape index: {}]
  %s1 = inlined_call_operand.hbm [shape: f32[2,1024], index: 1, kind: output, shape index: {}]
  %s2 = sld [smem:[#allocation0]]
  $region18: #{tpu_custom_call.1} parent=0
    _
  %s4 = ssub.s32 1, %s2
  %s5 = scalar_select 0, %s4, %s2
  $region1: #{tpu_custom_call.1} parent=0
    #allocation2 [shape = 'u8[8192]{0}', space=vmem, size = 0x2000, scoped, tag = 'input window, operand 0, single buffered']
    #allocation3 [shape = 's32[1]{0}', space=sflag, size = 0x4, scoped, tag = 'scoped memory for tpu_custom_call.1']
    #allocation4 [shape = 's32[1]{0}', space=sflag, size = 0x4, scoped, tag = 'scoped memory for tpu_custom_call.1']
    #allocation5 [shape = 'u8[8192]{0}', space=vmem, size = 0x2000, scoped, tag = 'output window, operand 0, single buffered']
    %6 = vsyncpa [#allocation3], 0
    %7 = vsyncpa [#allocation4], 0
    // Predicated region
    $region2: #{tpu_custom_call.1} parent=1 // pred_check
      _
    $region3: #{tpu_custom_call.1} parent=1 // pred_check_branch
      %9 = sbr.rel (0) target = $region5
    $region4: #{tpu_custom_call.1} parent=1 // pred_region
      %s11 = ssub.s32 256, 256
      %12 = vsyncadd [#allocation3], %s11
      %s14 = sshll.u32 [#allocation2], 4
      %s15 = int_to_ptr.vmem [resolvable:$true] %s14
      %17 = dma.hbm_to_vmem [thread:$0]  %s0, 256, %s15, [#allocation3]
    $region5: #{tpu_custom_call.1} parent=1 // pred_fallthru
      _
    // Predicated region
    $region6: #{tpu_custom_call.1} parent=1 // pred_check
      _
    $region7: #{tpu_custom_call.1} parent=1 // pred_check_branch
      %19 = sbr.rel (0) target = $region9
    $region8: #{tpu_custom_call.1} parent=1 // pred_region
      %20 = dma.done [#allocation3], 256
    $region9: #{tpu_custom_call.1} parent=1 // pred_fallthru
      _
    %v21 = vld [vmem:[#allocation2] sm:$0xff]
    %v22 = vld [vmem:[#allocation2 + $0x8] sm:$0xff]
    %v23 = vsub.f32 0.0, %v21
    %v24 = vsub.f32 0.0, %v22
    %v25 = vmul.f32 %v23, 1.442695
    %v26 = vpow.pop %v25
    %v27 = vmul.f32 %v24, 1.442695
    %v28 = vpow.pop %v27
    %v29 = vadd.f32 %v26, 1.0
    %v30 = vadd.f32 %v28, 1.0
    %v31 = vrcp.pop %v29
    %v32 = vmul.f32 1.0, %v31
    %v33 = vrcp.pop %v30
    %v34 = vmul.f32 1.0, %v33
    %vm35 = vcmp.lt.f32.partialorder %v21, -8.0
    %vm36 = vcmp.lt.f32.partialorder %v22, -8.0
    %vm37 = vcmp.gt.f32.partialorder %v21, 8.0
    %vm38 = vcmp.gt.f32.partialorder %v22, 8.0
    %v39 = vsel %vm37, 1.0, %v32
    %v40 = vsel %vm38, 1.0, %v34
    %v41 = vsel %vm35, 0.0, %v39
    %v42 = vsel %vm36, 0.0, %v40
    %43 = vst [vmem:[#allocation5] sm:$0xff] %v41
    %44 = vst [vmem:[#allocation5 + $0x8] sm:$0xff] %v42
    // Predicated region
    $region10: #{tpu_custom_call.1} parent=1 // pred_check
      _
    $region11: #{tpu_custom_call.1} parent=1 // pred_check_branch
      %46 = sbr.rel (0) target = $region13
    $region12: #{tpu_custom_call.1} parent=1 // pred_region
      %s48 = ssub.s32 256, 256
      %49 = vsyncadd [#allocation4], %s48
      %s51 = sshll.u32 [#allocation5], 4
      %s52 = int_to_ptr.vmem [resolvable:$true] %s51
      %54 = dma.vmem_to_hbm [thread:$0]  %s52, 256, %s1, [#allocation4]
    $region13: #{tpu_custom_call.1} parent=1 // pred_fallthru
      _
    // Predicated region
    $region14: #{tpu_custom_call.1} parent=1 // pred_check
      _
    $region15: #{tpu_custom_call.1} parent=1 // pred_check_branch
      %56 = sbr.rel (0) target = $region17
    $region16: #{tpu_custom_call.1} parent=1 // pred_region
      %57 = dma.done [#allocation4], 256
    $region17: #{tpu_custom_call.1} parent=1 // pred_fallthru
      _
    %58 = vsyncpa [#allocation3], 1
    %59 = vsyncpa [#allocation4], 1

</llo_original>
